<compile_context>
chip_gen: v7x
topology: tpu7x:2x2x1
jax: 0.10.0
libtpu: 0.0.40
codegen_flags: <defaults>
</compile_context>

<pallas_src>
import math
from functools import partial

import numpy as np
import jax
import jax.numpy as jnp
from jax.experimental import pallas as pl
from jax.experimental.pallas import tpu as pltpu


# --------------------------------------------------------------------------------------
# Hardware-aware helpers
# --------------------------------------------------------------------------------------
_VMEM_CAP = None


def _vmem_capacity_bytes():
    """Per-core VMEM capacity for generation-aware tile budgeting (conservative fallback)."""
    global _VMEM_CAP
    if _VMEM_CAP is None:
        try:
            _VMEM_CAP = int(pltpu.get_tpu_info().vmem_capacity_bytes)
        except Exception:
            _VMEM_CAP = 64 * 1024 * 1024            # v7x worst case
        _VMEM_CAP = max(int(_VMEM_CAP), 32 * 1024 * 1024)
    return _VMEM_CAP


def _mosaic_params(dimension_semantics):
    limit = min(int(_vmem_capacity_bytes() * 0.8), 112 * 1024 * 1024)
    return pltpu.CompilerParams(dimension_semantics=dimension_semantics,
                                vmem_limit_bytes=limit)


def _pick_tile(dim, candidates):
    """Largest candidate that evenly divides `dim`, else the full dim (single block)."""
    for c in candidates:
        if c <= dim and dim % c == 0:
            return c
    return dim


# --------------------------------------------------------------------------------------
# Fused linear kernels:  [LayerNorm] -> matmul (bf16 MXU, f32 acc) -> +bias
#                        -> [GELU(tanh)] -> [+residual] -> bf16 store
# --------------------------------------------------------------------------------------
def _linear_resident_kernel(*refs, has_ln, has_res, activation, ln_eps):
    """Whole (K,N) weight resident in VMEM; one row tile of activations per grid step."""
    it = iter(refs)
    x_ref, w_ref, b_ref = next(it), next(it), next(it)
    g_ref = be_ref = r_ref = None
    if has_ln:
        g_ref, be_ref = next(it), next(it)
    if has_res:
        r_ref = next(it)
    o_ref = next(it)

    x = x_ref[...]                                           # (tm, K) bf16
    if has_ln:
        xf = x.astype(jnp.float32)
        mu = jnp.mean(xf, axis=-1, keepdims=True)
        xc = xf - mu
        var = jnp.mean(xc * xc, axis=-1, keepdims=True)
        x = ((xc * jax.lax.rsqrt(var + ln_eps)) * g_ref[...] + be_ref[...]
             ).astype(jnp.bfloat16)
    y = jnp.dot(x, w_ref[...], preferred_element_type=jnp.float32) + b_ref[...]
    if activation == "gelu":
        y = jax.nn.gelu(y, approximate=True)                 # tanh approx -> EUP slot
    if has_res:
        y = y + r_ref[...].astype(jnp.float32)
    o_ref[...] = y.astype(o_ref.dtype)


def _linear_tiled_kernel(*refs, has_ln, has_res, activation, ln_eps):
    """Fallback: (M,N)-tiled with full K per row tile; LN result cached in VMEM scratch
    so it is computed once per row tile (at j==0), not once per output-column tile."""
    it = iter(refs)
    x_ref, w_ref, b_ref = next(it), next(it), next(it)
    g_ref = be_ref = r_ref = None
    if has_ln:
        g_ref, be_ref = next(it), next(it)
    if has_res:
        r_ref = next(it)
    o_ref = next(it)
    xln_ref = next(it, None)                                 # scratch, only when has_ln

    if has_ln:
        @pl.when(pl.program_id(1) == 0)
        def _ln():
            xf = x_ref[...].astype(jnp.float32)
            mu = jnp.mean(xf, axis=-1, keepdims=True)
            xc = xf - mu
            var = jnp.mean(xc * xc, axis=-1, keepdims=True)
            xln_ref[...] = ((xc * jax.lax.rsqrt(var + ln_eps)) * g_ref[...]
                            + be_ref[...]).astype(jnp.bfloat16)
        x = xln_ref[...]
    else:
        x = x_ref[...]
    y = jnp.dot(x, w_ref[...], preferred_element_type=jnp.float32) + b_ref[...]
    if activation == "gelu":
        y = jax.nn.gelu(y, approximate=True)
    if has_res:
        y = y + r_ref[...].astype(jnp.float32)
    o_ref[...] = y.astype(o_ref.dtype)


def pallas_linear(x2d, w, b, *, ln=None, ln_eps=1e-6, residual=None, activation=None,
                  out_dtype=jnp.bfloat16):
    """y = act(LN(x) @ w + b) [+ residual].  x:(M,K)  w:(K,N)  b:(N,)  -> (M,N) bf16."""
    M, K = x2d.shape
    N = w.shape[1]
    x2d = x2d.astype(jnp.bfloat16)
    w = w.astype(jnp.bfloat16)
    b2 = b.reshape(1, N).astype(jnp.float32)
    has_ln = ln is not None
    has_res = residual is not None

    cap = _vmem_capacity_bytes()
    budget = int(cap * 0.55)
    w_foot = 2 * (K * N * 2)                                 # double-buffered bf16 weight

    def _row_foot(tm_, n_cols):
        f = 2 * 2 * tm_ * K + 2 * 2 * tm_ * n_cols + 4 * tm_ * n_cols
        if has_res:
            f += 2 * 2 * tm_ * n_cols
        if has_ln:
            f += 2 * tm_ * K
        return f

    tm = None
    if w_foot <= int(cap * 0.35):
        for c in (1024, 512, 256, 128, 64, 32, 16):          # tm kept a multiple of 16
            if c <= M and M % c == 0 and w_foot + _row_foot(c, N) <= budget:
                tm = c
                break
        if tm is None and w_foot + _row_foot(M, N) <= budget:
            tm = M

    if tm is not None:
        # ---- resident-weight single-pass path ----
        in_specs = [pl.BlockSpec((tm, K), lambda i: (i, 0)),
                    pl.BlockSpec((K, N), lambda i: (0, 0)),   # constant block -> resident
                    pl.BlockSpec((1, N), lambda i: (0, 0))]
        args = [x2d, w, b2]
        if has_ln:
            g, bb = ln
            args += [g.reshape(1, K).astype(jnp.float32),
                     bb.reshape(1, K).astype(jnp.float32)]
            in_specs += [pl.BlockSpec((1, K), lambda i: (0, 0)),
                         pl.BlockSpec((1, K), lambda i: (0, 0))]
        if has_res:
            args.append(residual.reshape(M, N).astype(jnp.bfloat16))
            in_specs.append(pl.BlockSpec((tm, N), lambda i: (i, 0)))
        return pl.pallas_call(
            partial(_linear_resident_kernel, has_ln=has_ln, has_res=has_res,
                    activation=activation, ln_eps=ln_eps),
            out_shape=jax.ShapeDtypeStruct((M, N), out_dtype),
            grid=(M // tm,),
            in_specs=in_specs,
            out_specs=pl.BlockSpec((tm, N), lambda i: (i, 0)),
            compiler_params=_mosaic_params(("parallel",)),
        )(*args)

    # ---- (M,N)-tiled fallback (weight too large to keep resident) ----
    tm = _pick_tile(M, (512, 256, 128, 64, 32, 16))
    tn = _pick_tile(N, (512, 256, 128))
    in_specs = [pl.BlockSpec((tm, K), lambda i, j: (i, 0)),
                pl.BlockSpec((K, tn), lambda i, j: (0, j)),
                pl.BlockSpec((1, tn), lambda i, j: (0, j))]
    args = [x2d, w, b2]
    if has_ln:
        g, bb = ln
        args += [g.reshape(1, K).astype(jnp.float32),
                 bb.reshape(1, K).astype(jnp.float32)]
        in_specs += [pl.BlockSpec((1, K), lambda i, j: (0, 0)),
                     pl.BlockSpec((1, K), lambda i, j: (0, 0))]
    if has_res:
        args.append(residual.reshape(M, N).astype(jnp.bfloat16))
        in_specs.append(pl.BlockSpec((tm, tn), lambda i, j: (i, j)))
    scratch = [pltpu.VMEM((tm, K), jnp.bfloat16)] if has_ln else []
    # When the LN result is cached across j, keep j "arbitrary" so a megacore split of
    # the j axis can never skip the j==0 compute.
    sem = ("parallel", "arbitrary") if has_ln else ("parallel", "parallel")
    return pl.pallas_call(
        partial(_linear_tiled_kernel, has_ln=has_ln, has_res=has_res,
                activation=activation, ln_eps=ln_eps),
        out_shape=jax.ShapeDtypeStruct((M, N), out_dtype),
        grid=(M // tm, N // tn),
        in_specs=in_specs,
        out_specs=pl.BlockSpec((tm, tn), lambda i, j: (i, j)),
        scratch_shapes=scratch,
        compiler_params=_mosaic_params(sem),
    )(*args)


# --------------------------------------------------------------------------------------
# Standalone tiled LayerNorm (only used when window padding forbids LN fusion)
# --------------------------------------------------------------------------------------
def _layernorm_kernel(x_ref, g_ref, b_ref, o_ref, *, eps):
    x = x_ref[...].astype(jnp.float32)
    mu = jnp.mean(x, axis=-1, keepdims=True)
    xc = x - mu
    var = jnp.mean(xc * xc, axis=-1, keepdims=True)
    o_ref[...] = (xc * jax.lax.rsqrt(var + eps) * g_ref[...] + b_ref[...]
                  ).astype(o_ref.dtype)


def pallas_layernorm(x, gamma, beta, eps=1e-6):
    shape = x.shape
    C = shape[-1]
    x2d = x.reshape(-1, C).astype(jnp.bfloat16)
    M = x2d.shape[0]
    tm = _pick_tile(M, (2048, 1024, 512, 256, 128, 64, 32, 16))
    out = pl.pallas_call(
        partial(_layernorm_kernel, eps=eps),
        out_shape=jax.ShapeDtypeStruct((M, C), jnp.bfloat16),
        grid=(M // tm,),
        in_specs=[pl.BlockSpec((tm, C), lambda i: (i, 0)),
                  pl.BlockSpec((1, C), lambda i: (0, 0)),
                  pl.BlockSpec((1, C), lambda i: (0, 0))],
        out_specs=pl.BlockSpec((tm, C), lambda i: (i, 0)),
        compiler_params=_mosaic_params(("parallel",)),
    )(x2d, gamma.reshape(1, C).astype(jnp.float32), beta.reshape(1, C).astype(jnp.float32))
    return out.reshape(shape)


# --------------------------------------------------------------------------------------
# Attention kernels (q/k/v read directly out of the packed, head-padded QKV tensor)
# --------------------------------------------------------------------------------------
def _attn_single_kernel(q_ref, k_ref, v_ref, o_ref):
    """nkv == 1: scratch-free single-pass softmax.  q is pre-scaled (folded into weights)."""
    s = jnp.einsum("gqd,gkd->gqk", q_ref[...], k_ref[...],
                   preferred_element_type=jnp.float32)
    m = jnp.max(s, axis=-1, keepdims=True)
    p = jnp.exp(s - m)
    l = jnp.sum(p, axis=-1, keepdims=True)
    o = jnp.einsum("gqk,gkd->gqd", p.astype(jnp.bfloat16), v_ref[...],
                   preferred_element_type=jnp.float32)
    o_ref[...] = (o * pl.reciprocal(l, approx=True)).astype(o_ref.dtype)


def _attn_flash_kernel(q_ref, k_ref, v_ref, o_ref, m_sc, l_sc, acc_sc):
    """nkv > 1: KV-tiled online softmax (global-attention blocks at high resolution)."""
    kv = pl.program_id(3)

    @pl.when(kv == 0)
    def _init():
        m_sc[...] = jnp.full_like(m_sc, -jnp.inf)
        l_sc[...] = jnp.zeros_like(l_sc)
        acc_sc[...] = jnp.zeros_like(acc_sc)

    s = jnp.einsum("gqd,gkd->gqk", q_ref[...], k_ref[...],
                   preferred_element_type=jnp.float32)
    m_new = jnp.maximum(m_sc[...], jnp.max(s, axis=-1, keepdims=True))
    alpha = jnp.exp(m_sc[...] - m_new)
    p = jnp.exp(s - m_new)
    l_sc[...] = alpha * l_sc[...] + jnp.sum(p, axis=-1, keepdims=True)
    acc_sc[...] = alpha * acc_sc[...] + jnp.einsum(
        "gqk,gkd->gqd", p.astype(jnp.bfloat16), v_ref[...],
        preferred_element_type=jnp.float32)
    m_sc[...] = m_new

    @pl.when(kv == pl.num_programs(3) - 1)
    def _finish():
        o_ref[...] = (acc_sc[...] * pl.reciprocal(l_sc[...], approx=True)
                      ).astype(o_ref.dtype)


def pallas_attention_qkv(q_src, qkv, *, num_heads, head_dim_p):
    """softmax(q k^T) v with q/k/v sliced straight out of the packed QKV tensor.

    q_src : (Bw, Lq, >= nH*Dp) -- the pooled-q tensor, or `qkv` itself (q columns are the
            leading nH block-columns in both layouts).
    qkv   : (Bw, L, 3*nH*Dp)   -- per-head, Dp-padded, [q | k | v] column layout.
    Returns (Bw, Lq, nH*Dp) bf16, the layout the output projection consumes directly.
    """
    nH, Dp = num_heads, head_dim_p
    Bw, Lq, _ = q_src.shape
    L = qkv.shape[1]
    q_src = q_src.astype(jnp.bfloat16)
    qkv = qkv.astype(jnp.bfloat16)

    tq = _pick_tile(Lq, (512, 256, 128))
    tkv = _pick_tile(L, (1024, 512, 256, 128))
    nq, nkv = Lq // tq, L // tkv

    cap = _vmem_capacity_bytes()
    per_g = (2 * 2 * (2 * tq * Dp + 2 * tkv * Dp)            # double-buffered bf16 q,k,v,o
             + 4 * tq * (Dp + 2)                             # f32 flash scratch
             + 2 * 4 * tq * tkv)                             # transient f32 scores
    gb = 1
    for c in (128, 64, 32, 16, 8, 4, 2):
        if Bw % c == 0 and c * per_g <= int(cap * 0.4):
            gb = c
            break

    grid = (Bw // gb, nH, nq, nkv)
    q_spec = pl.BlockSpec((gb, tq, Dp), lambda g, h, qi, kv: (g, qi, h))
    k_spec = pl.BlockSpec((gb, tkv, Dp), lambda g, h, qi, kv: (g, kv, nH + h))
    v_spec = pl.BlockSpec((gb, tkv, Dp), lambda g, h, qi, kv: (g, kv, 2 * nH + h))
    o_spec = pl.BlockSpec((gb, tq, Dp), lambda g, h, qi, kv: (g, qi, h))

    if nkv == 1:
        kernel, scratch = _attn_single_kernel, []
    else:
        kernel = _attn_flash_kernel
        scratch = [pltpu.VMEM((gb, tq, 1), jnp.float32),
                   pltpu.VMEM((gb, tq, 1), jnp.float32),
                   pltpu.VMEM((gb, tq, Dp), jnp.float32)]

    return pl.pallas_call(
        kernel,
        out_shape=jax.ShapeDtypeStruct((Bw, Lq, nH * Dp), jnp.bfloat16),
        grid=grid,
        in_specs=[q_spec, k_spec, v_spec],
        out_specs=o_spec,
        scratch_shapes=scratch,
        compiler_params=_mosaic_params(
            ("parallel", "parallel", "parallel", "arbitrary")),
    )(q_src, qkv, qkv)


# --------------------------------------------------------------------------------------
# Plain-JAX glue (data movement / parameter preprocessing)
# --------------------------------------------------------------------------------------
def maxpool2d_nhwc(x, stride):
    """nn.MaxPool2d(kernel_size=stride, stride=stride, ceil_mode=False) on NHWC."""
    B, H, W, C = x.shape
    sh, sw = stride
    Ho, Wo = H // sh, W // sw
    x = x[:, :Ho * sh, :Wo * sw, :].reshape(B, Ho, sh, Wo, sw, C)
    return jnp.max(x, axis=(2, 4))


def window_partition(x, window_size):
    B, H, W, C = x.shape
    pad_h = (window_size - H % window_size) % window_size
    pad_w = (window_size - W % window_size) % window_size
    if pad_h or pad_w:
        x = jnp.pad(x, ((0, 0), (0, pad_h), (0, pad_w), (0, 0)))
    Hp, Wp = H + pad_h, W + pad_w
    x = x.reshape(B, Hp // window_size, window_size, Wp // window_size, window_size, C)
    windows = x.transpose(0, 1, 3, 2, 4, 5).reshape(-1, window_size, window_size, C)
    return windows, (Hp, Wp)


def window_unpartition(windows, window_size, pad_hw, hw):
    Hp, Wp = pad_hw
    H, W = hw
    B = windows.shape[0] // (Hp * Wp // window_size // window_size)
    x = windows.reshape(B, Hp // window_size, Wp // window_size,
                        window_size, window_size, -1)
    x = x.transpose(0, 1, 3, 2, 4, 5).reshape(B, Hp, Wp, -1)
    return x[:, :H, :W, :]


def _bicubic_matrix(in_size, out_size):
    """Row interpolation matrix matching F.interpolate(mode='bicubic', align_corners=False)."""
    A = -0.75
    M = np.zeros((out_size, in_size), dtype=np.float32)
    scale = in_size / out_size
    for o in range(out_size):
        coord = (o + 0.5) * scale - 0.5
        f = math.floor(coord)
        t = coord - f
        ws = [
            ((A * (t + 1.0) - 5.0 * A) * (t + 1.0) + 8.0 * A) * (t + 1.0) - 4.0 * A,
            ((A + 2.0) * t - (A + 3.0)) * t * t + 1.0,
            ((A + 2.0) * (1.0 - t) - (A + 3.0)) * (1.0 - t) * (1.0 - t) + 1.0,
            ((A * (2.0 - t) - 5.0 * A) * (2.0 - t) + 8.0 * A) * (2.0 - t) - 4.0 * A,
        ]
        for kk in range(4):
            idx = min(max(f - 1 + kk, 0), in_size - 1)
            M[o, idx] += ws[kk]
    return M


def patch_embed(x_nchw, w, b, *, stride=(4, 4), padding=(3, 3)):
    """Conv2d(in, embed, 7, stride=4, pad=3) stem -> NHWC bf16."""
    # TODO(synk): stream an im2col LHS straight into a Pallas matmul (manual DMA) instead
    # of running the stem through XLA's convolution.
    y = jax.lax.conv_general_dilated(
        x_nchw.astype(jnp.float32), w.astype(jnp.float32),
        window_strides=stride,
        padding=[(padding[0], padding[0]), (padding[1], padding[1])],
        dimension_numbers=("NCHW", "OIHW", "NCHW"))
    y = y + b.reshape(1, -1, 1, 1)
    return jnp.transpose(y, (0, 2, 3, 1)).astype(jnp.bfloat16)


# --------------------------------------------------------------------------------------
# MultiScaleAttention / MultiScaleBlock
# --------------------------------------------------------------------------------------
def multiscale_attention(x, p, cfg, ln=None):
    Bw, H, W, Cin = x.shape
    nH, Dp, dim_out = cfg["num_heads"], cfg["head_dim_p"], cfg["dim_out"]
    q_stride = cfg["q_stride"]

    # QKV linear with norm1 fused into its LHS tile (when no window padding).  The weight
    # is pre-padded so each head's q/k/v slice is 128-wide (lane-dense) and q is pre-scaled.
    qkv = pallas_linear(x.reshape(-1, Cin), p["qkv_w_p"], p["qkv_b_p"], ln=ln)
    qkv = qkv.reshape(Bw, H * W, 3 * nH * Dp)

    if q_stride is not None:
        qc = nH * Dp
        qpart = qkv[:, :, :qc].reshape(Bw, H, W, qc)
        qpool = maxpool2d_nhwc(qpart, q_stride)               # max over zero-pads stays 0
        Hq, Wq = qpool.shape[1], qpool.shape[2]
        q_src = qpool.reshape(Bw, Hq * Wq, qc)
    else:
        Hq, Wq = H, W
        q_src = qkv                                           # q = leading nH block-columns

    o = pallas_attention_qkv(q_src, qkv, num_heads=nH, head_dim_p=Dp)
    o = pallas_linear(o.reshape(-1, nH * Dp), p["proj_w_p"], p["attn_proj_b"])
    return o.reshape(Bw, Hq, Wq, dim_out)


def multiscale_block(x, p, cfg):
    dim, dim_out = cfg["dim"], cfg["dim_out"]
    q_stride, window_size = cfg["q_stride"], cfg["window_size"]
    B, H, W, _ = x.shape
    shortcut = x

    win = window_size
    needs_pad = win > 0 and ((H % win != 0) or (W % win != 0))
    if needs_pad:
        # Reference zero-pads the *normalized* tensor before windowing, so LN cannot be
        # fused past the partition; use the standalone tiled LN kernel instead.
        xsrc = pallas_layernorm(x, p["norm1_g"], p["norm1_b"])
        ln1 = None
    else:
        xsrc = x
        ln1 = (p["norm1_g"], p["norm1_b"])

    if dim != dim_out:
        sc = pallas_linear(xsrc.reshape(-1, dim), p["proj_w"], p["proj_b"], ln=ln1)
        sc = sc.reshape(B, H, W, dim_out)
        if q_stride is not None:
            sc = maxpool2d_nhwc(sc, q_stride)
        shortcut = sc

    xa = xsrc
    pad_hw = (H, W)
    if win > 0:
        xa, pad_hw = window_partition(xa, win)

    xa = multiscale_attention(xa, p, cfg, ln=ln1)

    if q_stride is not None:
        win = window_size // q_stride[0]
        H, W = shortcut.shape[1], shortcut.shape[2]
        pad_h = (win - H % win) % win if win > 0 else 0
        pad_w = (win - W % win) % win if win > 0 else 0
        pad_hw = (H + pad_h, W + pad_w)

    if window_size > 0:
        xa = window_unpartition(xa, win, pad_hw, (H, W))

    x = shortcut + xa                                          # drop_path = 0 -> identity

    # MLP: norm2 + bias + GELU fused into matmul-1, residual add fused into matmul-2.
    x_flat = x.reshape(-1, dim_out)
    h = pallas_linear(x_flat, p["mlp_w1"], p["mlp_b1"],
                      ln=(p["norm2_g"], p["norm2_b"]), activation="gelu")
    out = pallas_linear(h, p["mlp_w2"], p["mlp_b2"], residual=x_flat)
    return out.reshape(x.shape)


# --------------------------------------------------------------------------------------
# Hiera
# --------------------------------------------------------------------------------------
class HieraPallas:
    def __init__(self, key, embed_dim=96, num_heads=1, q_pool=3, q_stride=(2, 2),
                 stages=(2, 3, 16, 3), dim_mul=2.0, head_mul=2.0,
                 window_pos_embed_bkg_spatial_size=(14, 14),
                 window_spec=(8, 4, 14, 7), global_att_blocks=(12, 16, 20),
                 return_interm_layers=True, mlp_ratio=4.0, in_chans=3):
        assert len(stages) == len(window_spec)
        self.window_spec = window_spec
        depth = sum(stages)
        self.q_stride = q_stride
        self.stage_ends = [sum(stages[:i]) - 1 for i in range(1, len(stages) + 1)]
        assert 0 <= q_pool <= len(self.stage_ends[:-1])
        self.q_pool_blocks = [x + 1 for x in self.stage_ends[:-1]][:q_pool]
        self.return_interm_layers = return_interm_layers
        self.global_att_blocks = global_att_blocks

        keys = iter(jax.random.split(key, 16 + depth * 16))

        def nrm(shape, scale):
            return scale * jax.random.normal(next(keys), shape, dtype=jnp.float32)

        self.params = {
            "patch_w": nrm((embed_dim, in_chans, 7, 7), 0.05),
            "patch_b": nrm((embed_dim,), 0.02),
            "pos_embed": nrm((1, embed_dim) + tuple(window_pos_embed_bkg_spatial_size), 0.02),
            "pos_embed_window": nrm((1, embed_dim, window_spec[0], window_spec[0]), 0.02),
        }

        cur_stage = 1
        self.block_cfgs = []
        self.block_params = []
        for i in range(depth):
            dim_out = embed_dim
            window_size = window_spec[cur_stage - 1]
            if global_att_blocks is not None:
                window_size = 0 if i in global_att_blocks else window_size
            if i - 1 in self.stage_ends:
                dim_out = int(embed_dim * dim_mul)
                num_heads = int(num_heads * head_mul)
                cur_stage += 1
            qs = q_stride if i in self.q_pool_blocks else None
            hidden = int(dim_out * mlp_ratio)

            dh = dim_out // num_heads
            Dp = 128 * ((dh + 127) // 128)                    # lane-dense head dim
            scale = dh ** -0.5

            # Reference-layout parameters ...
            qkv_w = nrm((embed_dim, 3 * dim_out), 1.0 / math.sqrt(embed_dim))
            qkv_b = nrm((3 * dim_out,), 0.02)
            attn_proj_w = nrm((dim_out, dim_out), 1.0 / math.sqrt(dim_out))

            # ... repacked: per-head Dp-padded [q|k|v] columns, softmax scale folded into q.
            wq = qkv_w.reshape(embed_dim, 3, num_heads, dh)
            wq_p = jnp.zeros((embed_dim, 3, num_heads, Dp), jnp.float32).at[..., :dh].set(wq)
            wq_p = wq_p.at[:, 0].multiply(scale)
            bq = qkv_b.reshape(3, num_heads, dh)
            bq_p = jnp.zeros((3, num_heads, Dp), jnp.float32).at[..., :dh].set(bq)
            bq_p = bq_p.at[0].multiply(scale)
            pw = attn_proj_w.reshape(num_heads, dh, dim_out)
            pw_p = jnp.zeros((num_heads, Dp, dim_out), jnp.float32).at[:, :dh].set(pw)

            p = dict(
                norm1_g=jnp.ones((embed_dim,), jnp.float32),
                norm1_b=jnp.zeros((embed_dim,), jnp.float32),
                qkv_w_p=wq_p.reshape(embed_dim, 3 * num_heads * Dp),
                qkv_b_p=bq_p.reshape(3 * num_heads * Dp),
                proj_w_p=pw_p.reshape(num_heads * Dp, dim_out),
                attn_proj_b=nrm((dim_out,), 0.02),
                norm2_g=jnp.ones((dim_out,), jnp.float32),
                norm2_b=jnp.zeros((dim_out,), jnp.float32),
                mlp_w1=nrm((dim_out, hidden), 1.0 / math.sqrt(dim_out)),
                mlp_b1=nrm((hidden,), 0.02),
                mlp_w2=nrm((hidden, dim_out), 1.0 / math.sqrt(hidden)),
                mlp_b2=nrm((dim_out,), 0.02),
            )
            if embed_dim != dim_out:
                p["proj_w"] = nrm((embed_dim, dim_out), 1.0 / math.sqrt(embed_dim))
                p["proj_b"] = nrm((dim_out,), 0.02)
            self.block_params.append(p)
            self.block_cfgs.append(dict(dim=embed_dim, dim_out=dim_out, num_heads=num_heads,
                                        head_dim_p=Dp, q_stride=qs, window_size=window_size))
            embed_dim = dim_out

        self.channel_list = ([self.block_cfgs[i]["dim_out"] for i in self.stage_ends[::-1]]
                             if return_interm_layers else [self.block_cfgs[-1]["dim_out"]])

    def _get_pos_embed(self, hw):
        h, w = hw
        pe = self.params["pos_embed"]                          # (1, C, Hb, Wb)
        Mh = jnp.asarray(_bicubic_matrix(pe.shape[2], h))
        Mw = jnp.asarray(_bicubic_matrix(pe.shape[3], w))
        pos = jnp.einsum("oh,bchw,pw->bcop", Mh, pe, Mw)       # bicubic resize to (h, w)
        win = self.params["pos_embed_window"]
        reps = [x // y for x, y in zip(pos.shape, win.shape)]
        pos = pos + jnp.tile(win, reps)
        return pos.transpose(0, 2, 3, 1).astype(jnp.bfloat16)  # (1, h, w, C) bf16

    def __call__(self, x_nchw):
        x = patch_embed(x_nchw, self.params["patch_w"], self.params["patch_b"])
        x = x + self._get_pos_embed(x.shape[1:3])
        outputs = []
        for i, (cfg, p) in enumerate(zip(self.block_cfgs, self.block_params)):
            x = multiscale_block(x, p, cfg)
            if i == self.stage_ends[-1] or (i in self.stage_ends and self.return_interm_layers):
                outputs.append(jnp.transpose(x, (0, 3, 1, 2)).astype(jnp.float32))  # NCHW
        return outputs


# --------------------------------------------------------------------------------------
if __name__ == "__main__":
    key = jax.random.PRNGKey(0)
    kp, kx = jax.random.split(key)

    # Small Hiera: 4 stages of 1 block each, embed_dim 32 doubling each stage,
    # q-pooling after each of the first 3 stage boundaries, block 0 uses global attention.
    model = HieraPallas(
        kp,
        embed_dim=32,
        num_heads=1,
        q_pool=3,
        q_stride=(2, 2),
        stages=(1, 1, 1, 1),
        dim_mul=2.0,
        head_mul=2.0,
        window_pos_embed_bkg_spatial_size=(14, 14),
        window_spec=(8, 4, 4, 2),
        global_att_blocks=(0,),
        return_interm_layers=True,
    )

    x = jax.random.normal(kx, (2, 3, 32, 32), dtype=jnp.float32)   # NCHW input image
    outs = model(x)
    outs = jax.block_until_ready(outs)

    expected = [(2, 32, 8, 8), (2, 64, 4, 4), (2, 128, 2, 2), (2, 256, 1, 1)]
    assert [tuple(o.shape) for o in outs] == expected, [tuple(o.shape) for o in outs]
    assert all(bool(jnp.all(jnp.isfinite(o))) for o in outs)
    print("KERNEL_OK")
</pallas_src>

<mosaic_0001>
module attributes {stable_mosaic.version = 11 : i64} {
  func.func @_linear_resident_kernel(%arg0: i32, %arg1: memref<128x32xbf16, #tpu.memory_space<vmem>>, %arg2: memref<32x384xbf16, #tpu.memory_space<vmem>>, %arg3: memref<1x384xf32, #tpu.memory_space<vmem>>, %arg4: memref<1x32xf32, #tpu.memory_space<vmem>>, %arg5: memref<1x32xf32, #tpu.memory_space<vmem>>, %arg6: memref<128x384xbf16, #tpu.memory_space<vmem>>) attributes {dimension_semantics = [#tpu.dimension_semantics<parallel>], iteration_bounds = array<i64: 1>, scalar_prefetch = 0 : i64, scratch_operands = 0 : i64, tpu.core_type = #tpu.core_type<tc>, window_params = [{transform_indices = @transform_0, window_bounds = array<i64: 128, 32>}, {pipeline_mode = #tpu.pipeline_mode<synchronous>, transform_indices = @transform_1, window_bounds = array<i64: 32, 384>}, {pipeline_mode = #tpu.pipeline_mode<synchronous>, transform_indices = @transform_2, window_bounds = array<i64: 1, 384>}, {pipeline_mode = #tpu.pipeline_mode<synchronous>, transform_indices = @transform_3, window_bounds = array<i64: 1, 32>}, {pipeline_mode = #tpu.pipeline_mode<synchronous>, transform_indices = @transform_4, window_bounds = array<i64: 1, 32>}, {transform_indices = @transform_5, window_bounds = array<i64: 128, 384>}]} {
    %c0 = arith.constant 0 : index
    %c0_0 = arith.constant 0 : index
    %0 = vector.load %arg1[%c0, %c0_0] : memref<128x32xbf16, #tpu.memory_space<vmem>>, vector<128x32xbf16>
    %1 = arith.extf %0 : vector<128x32xbf16> to vector<128x32xf32>
    %cst = arith.constant dense<0.000000e+00> : vector<128xf32>
    %2 = vector.multi_reduction <add>, %1, %cst [1] : vector<128x32xf32> to vector<128xf32>
    %3 = vector.shape_cast %2 : vector<128xf32> to vector<128x1xf32>
    %cst_1 = arith.constant 3.200000e+01 : f32
    %4 = vector.broadcast %cst_1 : f32 to vector<128x1xf32>
    %5 = arith.divf %3, %4 : vector<128x1xf32>
    %6 = vector.broadcast %5 : vector<128x1xf32> to vector<128x32xf32>
    %7 = arith.subf %1, %6 : vector<128x32xf32>
    %8 = arith.mulf %7, %7 : vector<128x32xf32>
    %cst_2 = arith.constant dense<0.000000e+00> : vector<128xf32>
    %9 = vector.multi_reduction <add>, %8, %cst_2 [1] : vector<128x32xf32> to vector<128xf32>
    %10 = vector.shape_cast %9 : vector<128xf32> to vector<128x1xf32>
    %cst_3 = arith.constant 3.200000e+01 : f32
    %11 = vector.broadcast %cst_3 : f32 to vector<128x1xf32>
    %12 = arith.divf %10, %11 : vector<128x1xf32>
    %cst_4 = arith.constant 9.99999997E-7 : f32
    %13 = vector.broadcast %cst_4 : f32 to vector<128x1xf32>
    %14 = arith.addf %12, %13 : vector<128x1xf32>
    %15 = math.rsqrt %14 : vector<128x1xf32>
    %16 = vector.broadcast %15 : vector<128x1xf32> to vector<128x32xf32>
    %17 = arith.mulf %7, %16 : vector<128x32xf32>
    %c0_5 = arith.constant 0 : index
    %c0_6 = arith.constant 0 : index
    %18 = vector.load %arg4[%c0_5, %c0_6] : memref<1x32xf32, #tpu.memory_space<vmem>>, vector<1x32xf32>
    %19 = vector.broadcast %18 : vector<1x32xf32> to vector<128x32xf32>
    %20 = arith.mulf %17, %19 : vector<128x32xf32>
    %c0_7 = arith.constant 0 : index
    %c0_8 = arith.constant 0 : index
    %21 = vector.load %arg5[%c0_7, %c0_8] : memref<1x32xf32, #tpu.memory_space<vmem>>, vector<1x32xf32>
    %22 = vector.broadcast %21 : vector<1x32xf32> to vector<128x32xf32>
    %23 = arith.addf %20, %22 : vector<128x32xf32>
    %24 = arith.truncf %23 : vector<128x32xf32> to vector<128x32xbf16>
    %c0_9 = arith.constant 0 : index
    %c0_10 = arith.constant 0 : index
    %25 = vector.load %arg2[%c0_9, %c0_10] : memref<32x384xbf16, #tpu.memory_space<vmem>>, vector<32x384xbf16>
    %cst_11 = arith.constant dense<0.000000e+00> : vector<128x384xf32>
    %26 = tpu.matmul %24, %25, %cst_11 {dimension_numbers = #tpu.dot_dimension_numbers<[1], [0], [0], [1], [0, 0, 1, 1], [], []>} : vector<128x32xbf16>, vector<32x384xbf16>, vector<128x384xf32> -> vector<128x384xf32>
    %c0_12 = arith.constant 0 : index
    %c0_13 = arith.constant 0 : index
    %27 = vector.load %arg3[%c0_12, %c0_13] : memref<1x384xf32, #tpu.memory_space<vmem>>, vector<1x384xf32>
    %28 = vector.broadcast %27 : vector<1x384xf32> to vector<128x384xf32>
    %29 = arith.addf %26, %28 : vector<128x384xf32>
    %30 = arith.truncf %29 : vector<128x384xf32> to vector<128x384xbf16>
    %c0_14 = arith.constant 0 : index
    %c0_15 = arith.constant 0 : index
    %31 = vector.load %arg6[%c0_14, %c0_15] : memref<128x384xbf16, #tpu.memory_space<vmem>>, vector<128x384xbf16>
    tpu.vector_store %arg6[%c0_14, %c0_15], %30 {strides = array<i32>} : memref<128x384xbf16, #tpu.memory_space<vmem>>, vector<128x384xbf16>,
    return
  }
  func.func @transform_0(%arg0: i32) -> (i32, i32) {
    %c0_i32 = arith.constant 0 : i32
    %c0_i32_0 = arith.constant 0 : i32
    return %arg0, %c0_i32 : i32, i32
  }
  func.func @transform_1(%arg0: i32) -> (i32, i32) {
    %c0_i32 = arith.constant 0 : i32
    %c0_i32_0 = arith.constant 0 : i32
    %c0_i32_1 = arith.constant 0 : i32
    return %c0_i32, %c0_i32_0 : i32, i32
  }
  func.func @transform_2(%arg0: i32) -> (i32, i32) {
    %c0_i32 = arith.constant 0 : i32
    %c0_i32_0 = arith.constant 0 : i32
    %c0_i32_1 = arith.constant 0 : i32
    return %c0_i32, %c0_i32_0 : i32, i32
  }
  func.func @transform_3(%arg0: i32) -> (i32, i32) {
    %c0_i32 = arith.constant 0 : i32
    %c0_i32_0 = arith.constant 0 : i32
    %c0_i32_1 = arith.constant 0 : i32
    return %c0_i32, %c0_i32_0 : i32, i32
  }
  func.func @transform_4(%arg0: i32) -> (i32, i32) {
    %c0_i32 = arith.constant 0 : i32
    %c0_i32_0 = arith.constant 0 : i32
    %c0_i32_1 = arith.constant 0 : i32
    return %c0_i32, %c0_i32_0 : i32, i32
  }
  func.func @transform_5(%arg0: i32) -> (i32, i32) {
    %c0_i32 = arith.constant 0 : i32
    %c0_i32_0 = arith.constant 0 : i32
    return %arg0, %c0_i32 : i32, i32
  }
}

</mosaic_0001>

<llo_original>
// kernel: tpu_custom_call.1
$region0: #{tpu_custom_call.1}
  #allocation0 [shape = 'u32[]', space=smem, size = 0x4, offset = 0x4, fixed_abs, tag = 'smem constant byte address 0x4 - core index']
  #allocation1 [shape = 'u32[144,128]{1,0:T(1,128)}', space=vmem, size = 0x12000, scoped, tag = 'internal scratch']
  %s0 = inlined_call_operand.vmem [shape: bf16[128,32], index: 0, kind: input, shape index: {}]
  %s1 = inlined_call_operand.vmem [shape: bf16[32,384], index: 1, kind: input, shape index: {}]
  %s2 = inlined_call_operand.vmem [shape: f32[1,384], index: 2, kind: input, shape index: {}]
  %s3 = inlined_call_operand.vmem [shape: f32[1,32], index: 3, kind: input, shape index: {}]
  %s4 = inlined_call_operand.vmem [shape: f32[1,32], index: 4, kind: input, shape index: {}]
  %s5 = inlined_call_operand.hbm [shape: bf16[128,384], index: 5, kind: output, shape index: {}]
  %s6 = sld [smem:[#allocation0]]
  $region30: #{tpu_custom_call.1} parent=0
    _
  %s8 = ssub.s32 1, %s6
  %s9 = scalar_select 0, %s8, %s6
  $region1: #{tpu_custom_call.1} parent=0
    #allocation2 [shape = 'u8[98304]{0}', space=vmem, size = 0x18000, scoped, tag = 'output window, operand 0, single buffered']
    #allocation3 [shape = 's32[1]{0}', space=sflag, size = 0x4, scoped, tag = 'scoped memory for tpu_custom_call.1']
    %10 = vsyncpa [#allocation3], 0
    // Predicated region
    $region2: #{tpu_custom_call.1} parent=1 // pred_check
      _
    $region3: #{tpu_custom_call.1} parent=1 // pred_check_branch
      %12 = sbr.rel (0) target = $region5
    $region4: #{tpu_custom_call.1} parent=1 // pred_region
      _
    $region5: #{tpu_custom_call.1} parent=1 // pred_fallthru
      _
    // Predicated region
    $region6: #{tpu_custom_call.1} parent=1 // pred_check
      _
    $region7: #{tpu_custom_call.1} parent=1 // pred_check_branch
      %14 = sbr.rel (0) target = $region9
    $region8: #{tpu_custom_call.1} parent=1 // pred_region
      _
    $region9: #{tpu_custom_call.1} parent=1 // pred_fallthru
      _
    // Predicated region
    $region10: #{tpu_custom_call.1} parent=1 // pred_check
      _
    $region11: #{tpu_custom_call.1} parent=1 // pred_check_branch
      %16 = sbr.rel (0) target = $region13
    $region12: #{tpu_custom_call.1} parent=1 // pred_region
      _
    $region13: #{tpu_custom_call.1} parent=1 // pred_fallthru
      _
    // Predicated region
    $region14: #{tpu_custom_call.1} parent=1 // pred_check
      _
    $region15: #{tpu_custom_call.1} parent=1 // pred_check_branch
      %18 = sbr.rel (0) target = $region17
    $region16: #{tpu_custom_call.1} parent=1 // pred_region
      _
    $region17: #{tpu_custom_call.1} parent=1 // pred_fallthru
      _
    // Predicated region
    $region18: #{tpu_custom_call.1} parent=1 // pred_check
      _
    $region19: #{tpu_custom_call.1} parent=1 // pred_check_branch
      %20 = sbr.rel (0) target = $region21
    $region20: #{tpu_custom_call.1} parent=1 // pred_region
      _
    $region21: #{tpu_custom_call.1} parent=1 // pred_fallthru
      _
    %v22 = vld [vmem:[%s0] sm:$0xf]
    %v23 = vld [vmem:[%s0 + $0x4] sm:$0xf]
    %v24 = vld [vmem:[%s0 + $0x8] sm:$0xf]
    %v25 = vld [vmem:[%s0 + $0xc] sm:$0xf]
    %v26 = vld [vmem:[%s0 + $0x10] sm:$0xf]
    %v27 = vld [vmem:[%s0 + $0x14] sm:$0xf]
    %v28 = vld [vmem:[%s0 + $0x18] sm:$0xf]
    %v29 = vld [vmem:[%s0 + $0x1c] sm:$0xf]
    %v30 = vld [vmem:[%s0 + $0x20] sm:$0xf]
    %v31 = vld [vmem:[%s0 + $0x24] sm:$0xf]
    %v32 = vld [vmem:[%s0 + $0x28] sm:$0xf]
    %v33 = vld [vmem:[%s0 + $0x2c] sm:$0xf]
    %v34 = vld [vmem:[%s0 + $0x30] sm:$0xf]
    %v35 = vld [vmem:[%s0 + $0x34] sm:$0xf]
    %v36 = vld [vmem:[%s0 + $0x38] sm:$0xf]
    %v37 = vld [vmem:[%s0 + $0x3c] sm:$0xf]
    %v38 = vunpack.c.l.bf16 %v22
    %v39 = vunpack.c.l.bf16 %v23
    %v40 = vunpack.c.l.bf16 %v24
    %v41 = vunpack.c.l.bf16 %v25
    %v42 = vunpack.c.l.bf16 %v26
    %v43 = vunpack.c.l.bf16 %v27
    %v44 = vunpack.c.l.bf16 %v28
    %v45 = vunpack.c.l.bf16 %v29
    %v46 = vunpack.c.l.bf16 %v30
    %v47 = vunpack.c.l.bf16 %v31
    %v48 = vunpack.c.l.bf16 %v32
    %v49 = vunpack.c.l.bf16 %v33
    %v50 = vunpack.c.l.bf16 %v34
    %v51 = vunpack.c.l.bf16 %v35
    %v52 = vunpack.c.l.bf16 %v36
    %v53 = vunpack.c.l.bf16 %v37
    %vm54 = vcmask 261120
    %v55 = vsel %vm54, %v38, 0.0
    %56 = vadd.xlane.f32.xlu0 %v55
    %v57 = vpop.xlane.xlu0 %56
    %v58 = vsel %vm54, %v39, 0.0
    %59 = vadd.xlane.f32.xlu0 %v58
    %v60 = vpop.xlane.xlu0 %59
    %v61 = vsel %vm54, %v40, 0.0
    %62 = vadd.xlane.f32.xlu0 %v61
    %v63 = vpop.xlane.xlu0 %62
    %v64 = vsel %vm54, %v41, 0.0
    %65 = vadd.xlane.f32.xlu0 %v64
    %v66 = vpop.xlane.xlu0 %65
    %v67 = vsel %vm54, %v42, 0.0
    %68 = vadd.xlane.f32.xlu0 %v67
    %v69 = vpop.xlane.xlu0 %68
    %v70 = vsel %vm54, %v43, 0.0
    %71 = vadd.xlane.f32.xlu0 %v70
    %v72 = vpop.xlane.xlu0 %71
    %v73 = vsel %vm54, %v44, 0.0
    %74 = vadd.xlane.f32.xlu0 %v73
    %v75 = vpop.xlane.xlu0 %74
    %v76 = vsel %vm54, %v45, 0.0
    %77 = vadd.xlane.f32.xlu0 %v76
    %v78 = vpop.xlane.xlu0 %77
    %v79 = vsel %vm54, %v46, 0.0
    %80 = vadd.xlane.f32.xlu0 %v79
    %v81 = vpop.xlane.xlu0 %80
    %v82 = vsel %vm54, %v47, 0.0
    %83 = vadd.xlane.f32.xlu0 %v82
    %v84 = vpop.xlane.xlu0 %83
    %v85 = vsel %vm54, %v48, 0.0
    %86 = vadd.xlane.f32.xlu0 %v85
    %v87 = vpop.xlane.xlu0 %86
    %v88 = vsel %vm54, %v49, 0.0
    %89 = vadd.xlane.f32.xlu0 %v88
    %v90 = vpop.xlane.xlu0 %89
    %v91 = vsel %vm54, %v50, 0.0
    %92 = vadd.xlane.f32.xlu0 %v91
    %v93 = vpop.xlane.xlu0 %92
    %v94 = vsel %vm54, %v51, 0.0
    %95 = vadd.xlane.f32.xlu0 %v94
    %v96 = vpop.xlane.xlu0 %95
    %v97 = vsel %vm54, %v52, 0.0
    %98 = vadd.xlane.f32.xlu0 %v97
    %v99 = vpop.xlane.xlu0 %98
    %v100 = vsel %vm54, %v53, 0.0
    %101 = vadd.xlane.f32.xlu0 %v100
    %v102 = vpop.xlane.xlu0 %101
    %v103 = vrcp.pop 32.0
    %v104 = vmul.f32 %v57, %v103
    %v105 = vmul.f32 %v60, %v103
    %v106 = vmul.f32 %v63, %v103
    %v107 = vmul.f32 %v66, %v103
    %v108 = vmul.f32 %v69, %v103
    %v109 = vmul.f32 %v72, %v103
    %v110 = vmul.f32 %v75, %v103
    %v111 = vmul.f32 %v78, %v103
    %v112 = vmul.f32 %v81, %v103
    %v113 = vmul.f32 %v84, %v103
    %v114 = vmul.f32 %v87, %v103
    %v115 = vmul.f32 %v90, %v103
    %v116 = vmul.f32 %v93, %v103
    %v117 = vmul.f32 %v96, %v103
    %v118 = vmul.f32 %v99, %v103
    %v119 = vmul.f32 %v102, %v103
    %v120 = vsub.f32 %v38, %v104
    %v121 = vsub.f32 %v39, %v105
    %v122 = vsub.f32 %v40, %v106
    %v123 = vsub.f32 %v41, %v107
    %v124 = vsub.f32 %v42, %v108
    %v125 = vsub.f32 %v43, %v109
    %v126 = vsub.f32 %v44, %v110
    %v127 = vsub.f32 %v45, %v111
    %v128 = vsub.f32 %v46, %v112
    %v129 = vsub.f32 %v47, %v113
    %v130 = vsub.f32 %v48, %v114
    %v131 = vsub.f32 %v49, %v115
    %v132 = vsub.f32 %v50, %v116
    %v133 = vsub.f32 %v51, %v117
    %v134 = vsub.f32 %v52, %v118
    %v135 = vsub.f32 %v53, %v119
    %v136 = vmul.f32 %v120, %v120
    %v137 = vmul.f32 %v121, %v121
    %v138 = vmul.f32 %v122, %v122
    %v139 = vmul.f32 %v123, %v123
    %v140 = vmul.f32 %v124, %v124
    %v141 = vmul.f32 %v125, %v125
    %v142 = vmul.f32 %v126, %v126
    %v143 = vmul.f32 %v127, %v127
    %v144 = vmul.f32 %v128, %v128
    %v145 = vmul.f32 %v129, %v129
    %v146 = vmul.f32 %v130, %v130
    %v147 = vmul.f32 %v131, %v131
    %v148 = vmul.f32 %v132, %v132
    %v149 = vmul.f32 %v133, %v133
    %v150 = vmul.f32 %v134, %v134
    %v151 = vmul.f32 %v135, %v135
    %v152 = vsel %vm54, %v136, 0.0
    %153 = vadd.xlane.f32.xlu0 %v152
    %v154 = vpop.xlane.xlu0 %153
    %v155 = vsel %vm54, %v137, 0.0
    %156 = vadd.xlane.f32.xlu0 %v155
    %v157 = vpop.xlane.xlu0 %156
    %v158 = vsel %vm54, %v138, 0.0
    %159 = vadd.xlane.f32.xlu0 %v158
    %v160 = vpop.xlane.xlu0 %159
    %v161 = vsel %vm54, %v139, 0.0
    %162 = vadd.xlane.f32.xlu0 %v161
    %v163 = vpop.xlane.xlu0 %162
    %v164 = vsel %vm54, %v140, 0.0
    %165 = vadd.xlane.f32.xlu0 %v164
    %v166 = vpop.xlane.xlu0 %165
    %v167 = vsel %vm54, %v141, 0.0
    %168 = vadd.xlane.f32.xlu0 %v167
    %v169 = vpop.xlane.xlu0 %168
    %v170 = vsel %vm54, %v142, 0.0
    %171 = vadd.xlane.f32.xlu0 %v170
    %v172 = vpop.xlane.xlu0 %171
    %v173 = vsel %vm54, %v143, 0.0
    %174 = vadd.xlane.f32.xlu0 %v173
    %v175 = vpop.xlane.xlu0 %174
    %v176 = vsel %vm54, %v144, 0.0
    %177 = vadd.xlane.f32.xlu0 %v176
    %v178 = vpop.xlane.xlu0 %177
    %v179 = vsel %vm54, %v145, 0.0
    %180 = vadd.xlane.f32.xlu0 %v179
    %v181 = vpop.xlane.xlu0 %180
    %v182 = vsel %vm54, %v146, 0.0
    %183 = vadd.xlane.f32.xlu0 %v182
    %v184 = vpop.xlane.xlu0 %183
    %v185 = vsel %vm54, %v147, 0.0
    %186 = vadd.xlane.f32.xlu0 %v185
    %v187 = vpop.xlane.xlu0 %186
    %v188 = vsel %vm54, %v148, 0.0
    %189 = vadd.xlane.f32.xlu0 %v188
    %v190 = vpop.xlane.xlu0 %189
    %v191 = vsel %vm54, %v149, 0.0
    %192 = vadd.xlane.f32.xlu0 %v191
    %v193 = vpop.xlane.xlu0 %192
    %v194 = vsel %vm54, %v150, 0.0
    %195 = vadd.xlane.f32.xlu0 %v194
    %v196 = vpop.xlane.xlu0 %195
    %v197 = vsel %vm54, %v151, 0.0
    %198 = vadd.xlane.f32.xlu0 %v197
    %v199 = vpop.xlane.xlu0 %198
    %v200 = vmul.f32 %v154, %v103
    %v201 = vmul.f32 %v157, %v103
    %v202 = vmul.f32 %v160, %v103
    %v203 = vmul.f32 %v163, %v103
    %v204 = vmul.f32 %v166, %v103
    %v205 = vmul.f32 %v169, %v103
    %v206 = vmul.f32 %v172, %v103
    %v207 = vmul.f32 %v175, %v103
    %v208 = vmul.f32 %v178, %v103
    %v209 = vmul.f32 %v181, %v103
    %v210 = vmul.f32 %v184, %v103
    %v211 = vmul.f32 %v187, %v103
    %v212 = vmul.f32 %v190, %v103
    %v213 = vmul.f32 %v193, %v103
    %v214 = vmul.f32 %v196, %v103
    %v215 = vmul.f32 %v199, %v103
    %v216 = vadd.f32 %v200, 1e-06
    %v217 = vadd.f32 %v201, 1e-06
    %v218 = vadd.f32 %v202, 1e-06
    %v219 = vadd.f32 %v203, 1e-06
    %v220 = vadd.f32 %v204, 1e-06
    %v221 = vadd.f32 %v205, 1e-06
    %v222 = vadd.f32 %v206, 1e-06
    %v223 = vadd.f32 %v207, 1e-06
    %v224 = vadd.f32 %v208, 1e-06
    %v225 = vadd.f32 %v209, 1e-06
    %v226 = vadd.f32 %v210, 1e-06
    %v227 = vadd.f32 %v211, 1e-06
    %v228 = vadd.f32 %v212, 1e-06
    %v229 = vadd.f32 %v213, 1e-06
    %v230 = vadd.f32 %v214, 1e-06
    %v231 = vadd.f32 %v215, 1e-06
    %v232 = vrsqrt.pop %v216
    %v233 = vrsqrt.pop %v217
    %v234 = vrsqrt.pop %v218
    %v235 = vrsqrt.pop %v219
    %v236 = vrsqrt.pop %v220
    %v237 = vrsqrt.pop %v221
    %v238 = vrsqrt.pop %v222
    %v239 = vrsqrt.pop %v223
    %v240 = vrsqrt.pop %v224
    %v241 = vrsqrt.pop %v225
    %v242 = vrsqrt.pop %v226
    %v243 = vrsqrt.pop %v227
    %v244 = vrsqrt.pop %v228
    %v245 = vrsqrt.pop %v229
    %v246 = vrsqrt.pop %v230
    %v247 = vrsqrt.pop %v231
    %v248 = vmul.f32 %v120, %v232
    %v249 = vmul.f32 %v121, %v233
    %v250 = vmul.f32 %v122, %v234
    %v251 = vmul.f32 %v123, %v235
    %v252 = vmul.f32 %v124, %v236
    %v253 = vmul.f32 %v125, %v237
    %v254 = vmul.f32 %v126, %v238
    %v255 = vmul.f32 %v127, %v239
    %v256 = vmul.f32 %v128, %v240
    %v257 = vmul.f32 %v129, %v241
    %v258 = vmul.f32 %v130, %v242
    %v259 = vmul.f32 %v131, %v243
    %v260 = vmul.f32 %v132, %v244
    %v261 = vmul.f32 %v133, %v245
    %v262 = vmul.f32 %v134, %v246
    %v263 = vmul.f32 %v135, %v247
    %v264 = vld [vmem:[%s3] sm:$0x1]
    %v266 = vlaneseq
    %v267 = vshrl.u32 %v266, 7
    %v268 = vsub.s32 0, %v267
    %v269 = vrot.slane %v264, %v268
    %v271 = vmul.f32 %v248, %v269
    %v272 = vmul.f32 %v249, %v269
    %v273 = vmul.f32 %v250, %v269
    %v274 = vmul.f32 %v251, %v269
    %v275 = vmul.f32 %v252, %v269
    %v276 = vmul.f32 %v253, %v269
    %v277 = vmul.f32 %v254, %v269
    %v278 = vmul.f32 %v255, %v269
    %v279 = vmul.f32 %v256, %v269
    %v280 = vmul.f32 %v257, %v269
    %v281 = vmul.f32 %v258, %v269
    %v282 = vmul.f32 %v259, %v269
    %v283 = vmul.f32 %v260, %v269
    %v284 = vmul.f32 %v261, %v269
    %v285 = vmul.f32 %v262, %v269
    %v286 = vmul.f32 %v263, %v269
    %v287 = vld [vmem:[%s4] sm:$0x1]
    %v289 = vlaneseq
    %v290 = vshrl.u32 %v289, 7
    %v291 = vsub.s32 0, %v290
    %v292 = vrot.slane %v287, %v291
    %v294 = vadd.f32 %v271, %v292
    %v295 = vadd.f32 %v272, %v292
    %v296 = vadd.f32 %v273, %v292
    %v297 = vadd.f32 %v274, %v292
    %v298 = vadd.f32 %v275, %v292
    %v299 = vadd.f32 %v276, %v292
    %v300 = vadd.f32 %v277, %v292
    %v301 = vadd.f32 %v278, %v292
    %v302 = vadd.f32 %v279, %v292
    %v303 = vadd.f32 %v280, %v292
    %v304 = vadd.f32 %v281, %v292
    %v305 = vadd.f32 %v282, %v292
    %v306 = vadd.f32 %v283, %v292
    %v307 = vadd.f32 %v284, %v292
    %v308 = vadd.f32 %v285, %v292
    %v309 = vadd.f32 %v286, %v292
    %v310 = vpack.c.bf16 %v295, %v294
    %v311 = vpack.c.bf16 %v297, %v296
    %v312 = vpack.c.bf16 %v299, %v298
    %v313 = vpack.c.bf16 %v301, %v300
    %v314 = vpack.c.bf16 %v303, %v302
    %v315 = vpack.c.bf16 %v305, %v304
    %v316 = vpack.c.bf16 %v307, %v306
    %v317 = vpack.c.bf16 %v309, %v308
    %v318 = vld [vmem:[%s1] sm:$0xff]
    %v319 = vld [vmem:[%s1 + $0x8] sm:$0xf]
    %v320 = vld [vmem:[%s1 + $0xc] sm:$0xff]
    %v321 = vld [vmem:[%s1 + $0x14] sm:$0xf]
    %v322 = vld [vmem:[%s1 + $0x18] sm:$0xff]
    %v323 = vld [vmem:[%s1 + $0x20] sm:$0xf]
    %v324 = vld [vmem:[%s1 + $0x24] sm:$0xff]
    %v325 = vld [vmem:[%s1 + $0x2c] sm:$0xf]
    %v326 = vld [vmem:[%s2] sm:$0x7]
    %v328 = vlaneseq
    %v329 = vshrl.u32 %v328, 7
    %v330 = vsub.s32 0, %v329
    %v331 = vrot.slane %v326, %v330
    %v332 = vlaneseq
    %v333 = vshrl.u32 %v332, 7
    %v334 = vsub.s32 1, %v333
    %v335 = vrot.slane %v326, %v334
    %v336 = vlaneseq
    %v337 = vshrl.u32 %v336, 7
    %v338 = vsub.s32 2, %v337
    %v339 = vrot.slane %v326, %v338
    %v351 = vunpack.c.l.b16 %v318
    %v352 = vunpack.c.h.b16 %v318
    %v353 = vunpack.c.l.b16 %v319
    %v354 = vunpack.c.l.b16 %v320
    %v355 = vunpack.c.h.b16 %v320
    %v356 = vunpack.c.l.b16 %v321
    %v357 = vunpack.c.l.b16 %v322
    %v358 = vunpack.c.h.b16 %v322
    %v359 = vunpack.c.l.b16 %v323
    %v360 = vunpack.c.l.b16 %v324
    %v361 = vunpack.c.h.b16 %v324
    %v362 = vunpack.c.l.b16 %v325
    %v363 = vpack.c.b16 %v354, %v351
    %v364 = vpack.c.b16 %v355, %v352
    %v365 = vpack.c.b16 %v356, %v353
    %v366 = vpack.c.b16 %v360, %v357
    %v367 = vpack.c.b16 %v361, %v358
    %v368 = vpack.c.b16 %v362, %v359
    %v376 = vsel %vm54, %v310, 0
    %v379 = vsel %vm54, %v311, 0
    %v382 = vsel %vm54, %v312, 0
    %v385 = vsel %vm54, %v313, 0
    %v388 = vsel %vm54, %v314, 0
    %v391 = vsel %vm54, %v315, 0
    %v394 = vsel %vm54, %v316, 0
    %v397 = vsel %vm54, %v317, 0
    %399 = vmatprep.subr.bf16.mxu0 %v364
    %400 = vmatpush1.bf16.msra.mxu0 %v363
    %401 = vmatprep.subr.bf16.mxu0 %v367
    %402 = vmatpush1.bf16.msra.mxu0 %v366
    %403 = vmatprep.subr.bf16.mxu0 0
    %404 = vmatpush1.bf16.msra.mxu0 0
    %405 = vmatprep.subr.bf16.mxu0 0
    %406 = vmatpush1.bf16.msra.mxu0 0
    %407 = vmatprep.subr.bf16.mxu0 0
    %408 = vmatpush1.bf16.msra.mxu0 0
    %409 = vmatprep.subr.bf16.mxu0 0
    %410 = vmatpush1.bf16.msra.mxu0 0
    %411 = vmatprep.subr.bf16.mxu0 0
    %412 = vmatpush1.bf16.msra.mxu0 0
    %413 = vmatprep.subr.bf16.mxu0 0
    %414 = vmatpush1.bf16.msra.mxu0 0
    %415 = vmatprep.subr.bf16.mxu0 0
    %416 = vmatpush1.bf16.msra.mxu0 0
    %417 = vmatprep.subr.bf16.mxu0 0
    %418 = vmatpush1.bf16.msra.mxu0 0
    %419 = vmatprep.subr.bf16.mxu0 0
    %420 = vmatpush1.bf16.msra.mxu0 0
    %421 = vmatprep.subr.bf16.mxu0 0
    %422 = vmatpush1.bf16.msra.mxu0 0
    %423 = vmatprep.subr.bf16.mxu0 0
    %424 = vmatpush1.bf16.msra.mxu0 0
    %425 = vmatprep.subr.bf16.mxu0 0
    %426 = vmatpush1.bf16.msra.mxu0 0
    %427 = vmatprep.subr.bf16.mxu0 0
    %428 = vmatpush1.bf16.msra.mxu0 0
    %429 = vmatprep.subr.bf16.mxu0 0
    %430 = vmatpush1.bf16.msra.mxu0 0
    %431 = vmatprep.mubr.bf16.mxu0 0
    %432 = vmatmul.mubr.bf16.gmra.mrb[0].mxu0 %v376
    %v433 = vpop.f32.mrb[0].mxu0
    %v434 = vadd.f32 %v331, %v433
    %v435 = vpop.f32.mrb[0].mxu0
    %v436 = vadd.f32 %v335, %v435
    %v437 = vpop.f32.mrb[0].mxu0
    %v438 = vadd.f32 %v331, %v437
    %v439 = vpop.f32.mrb[0].mxu0
    %v440 = vadd.f32 %v335, %v439
    %441 = vmatprep.mubr.bf16.mxu0 0
    %442 = vmatmul.mubr.bf16.gmra.mrb[0].mxu0 %v379
    %v443 = vpop.f32.mrb[0].mxu0
    %v444 = vadd.f32 %v331, %v443
    %v445 = vpop.f32.mrb[0].mxu0
    %v446 = vadd.f32 %v335, %v445
    %v447 = vpop.f32.mrb[0].mxu0
    %v448 = vadd.f32 %v331, %v447
    %v449 = vpop.f32.mrb[0].mxu0
    %v450 = vadd.f32 %v335, %v449
    %451 = vmatprep.mubr.bf16.mxu0 0
    %452 = vmatmul.mubr.bf16.gmra.mrb[0].mxu0 %v382
    %v453 = vpop.f32.mrb[0].mxu0
    %v454 = vadd.f32 %v331, %v453
    %v455 = vpop.f32.mrb[0].mxu0
    %v456 = vadd.f32 %v335, %v455
    %v457 = vpop.f32.mrb[0].mxu0
    %v458 = vadd.f32 %v331, %v457
    %v459 = vpop.f32.mrb[0].mxu0
    %v460 = vadd.f32 %v335, %v459
    %461 = vmatprep.mubr.bf16.mxu0 0
    %462 = vmatmul.mubr.bf16.gmra.mrb[0].mxu0 %v385
    %v463 = vpop.f32.mrb[0].mxu0
    %v464 = vadd.f32 %v331, %v463
    %v465 = vpop.f32.mrb[0].mxu0
    %v466 = vadd.f32 %v335, %v465
    %v467 = vpop.f32.mrb[0].mxu0
    %v468 = vadd.f32 %v331, %v467
    %v469 = vpop.f32.mrb[0].mxu0
    %v470 = vadd.f32 %v335, %v469
    %471 = vmatprep.mubr.bf16.mxu0 0
    %472 = vmatmul.mubr.bf16.gmra.mrb[0].mxu0 %v388
    %v473 = vpop.f32.mrb[0].mxu0
    %v474 = vadd.f32 %v331, %v473
    %v475 = vpop.f32.mrb[0].mxu0
    %v476 = vadd.f32 %v335, %v475
    %v477 = vpop.f32.mrb[0].mxu0
    %v478 = vadd.f32 %v331, %v477
    %v479 = vpop.f32.mrb[0].mxu0
    %v480 = vadd.f32 %v335, %v479
    %481 = vmatprep.mubr.bf16.mxu0 0
    %482 = vmatmul.mubr.bf16.gmra.mrb[0].mxu0 %v391
    %v483 = vpop.f32.mrb[0].mxu0
    %v484 = vadd.f32 %v331, %v483
    %v485 = vpop.f32.mrb[0].mxu0
    %v486 = vadd.f32 %v335, %v485
    %v487 = vpop.f32.mrb[0].mxu0
    %v488 = vadd.f32 %v331, %v487
    %v489 = vpop.f32.mrb[0].mxu0
    %v490 = vadd.f32 %v335, %v489
    %491 = vmatprep.mubr.bf16.mxu0 0
    %492 = vmatmul.mubr.bf16.gmra.mrb[0].mxu0 %v394
    %v493 = vpop.f32.mrb[0].mxu0
    %v494 = vadd.f32 %v331, %v493
    %v495 = vpop.f32.mrb[0].mxu0
    %v496 = vadd.f32 %v335, %v495
    %v497 = vpop.f32.mrb[0].mxu0
    %v498 = vadd.f32 %v331, %v497
    %v499 = vpop.f32.mrb[0].mxu0
    %v500 = vadd.f32 %v335, %v499
    %501 = vmatprep.mubr.bf16.mxu0 0
    %502 = vmatmul.mubr.bf16.gmra.mrb[0].mxu0 %v397
    %v503 = vpop.f32.mrb[0].mxu0
    %v504 = vadd.f32 %v331, %v503
    %v505 = vpop.f32.mrb[0].mxu0
    %v506 = vadd.f32 %v335, %v505
    %v507 = vpop.f32.mrb[0].mxu0
    %v508 = vadd.f32 %v331, %v507
    %v509 = vpop.f32.mrb[0].mxu0
    %v510 = vadd.f32 %v335, %v509
    %511 = vdwg.mxu0
    %512 = vmatprep.subr.bf16.mxu0 0
    %513 = vmatpush1.bf16.msra.mxu0 %v365
    %514 = vmatprep.subr.bf16.mxu0 0
    %515 = vmatpush1.bf16.msra.mxu0 %v368
    %516 = vmatprep.subr.bf16.mxu0 0
    %517 = vmatpush1.bf16.msra.mxu0 0
    %518 = vmatprep.subr.bf16.mxu0 0
    %519 = vmatpush1.bf16.msra.mxu0 0
    %520 = vmatprep.subr.bf16.mxu0 0
    %521 = vmatpush1.bf16.msra.mxu0 0
    %522 = vmatprep.subr.bf16.mxu0 0
    %523 = vmatpush1.bf16.msra.mxu0 0
    %524 = vmatprep.subr.bf16.mxu0 0
    %525 = vmatpush1.bf16.msra.mxu0 0
    %526 = vmatprep.subr.bf16.mxu0 0
    %527 = vmatpush1.bf16.msra.mxu0 0
    %528 = vmatprep.subr.bf16.mxu0 0
    %529 = vmatpush1.bf16.msra.mxu0 0
    %530 = vmatprep.subr.bf16.mxu0 0
    %531 = vmatpush1.bf16.msra.mxu0 0
    %532 = vmatprep.subr.bf16.mxu0 0
    %533 = vmatpush1.bf16.msra.mxu0 0
    %534 = vmatprep.subr.bf16.mxu0 0
    %535 = vmatpush1.bf16.msra.mxu0 0
    %536 = vmatprep.subr.bf16.mxu0 0
    %537 = vmatpush1.bf16.msra.mxu0 0
    %538 = vmatprep.subr.bf16.mxu0 0
    %539 = vmatpush1.bf16.msra.mxu0 0
    %540 = vmatprep.subr.bf16.mxu0 0
    %541 = vmatpush1.bf16.msra.mxu0 0
    %542 = vmatprep.subr.bf16.mxu0 0
    %543 = vmatpush1.bf16.msra.mxu0 0
    %544 = vmatprep.mubr.bf16.mxu0 0
    %545 = vmatmul.mubr.bf16.gmra.mrb[0].mxu0 %v376
    %v546 = vpop.f32.mrb[0].mxu0
    %v547 = vadd.f32 %v339, %v546
    %v548 = vpop.f32.mrb[0].mxu0
    %v549 = vpop.f32.mrb[0].mxu0
    %v550 = vadd.f32 %v339, %v549
    %v551 = vpop.f32.mrb[0].mxu0
    %552 = vmatprep.mubr.bf16.mxu0 0
    %553 = vmatmul.mubr.bf16.gmra.mrb[0].mxu0 %v379
    %v554 = vpop.f32.mrb[0].mxu0
    %v555 = vadd.f32 %v339, %v554
    %v556 = vpop.f32.mrb[0].mxu0
    %v557 = vpop.f32.mrb[0].mxu0
    %v558 = vadd.f32 %v339, %v557
    %v559 = vpop.f32.mrb[0].mxu0
    %560 = vmatprep.mubr.bf16.mxu0 0
    %561 = vmatmul.mubr.bf16.gmra.mrb[0].mxu0 %v382
    %v562 = vpop.f32.mrb[0].mxu0
    %v563 = vadd.f32 %v339, %v562
    %v564 = vpop.f32.mrb[0].mxu0
    %v565 = vpop.f32.mrb[0].mxu0
    %v566 = vadd.f32 %v339, %v565
    %v567 = vpop.f32.mrb[0].mxu0
    %568 = vmatprep.mubr.bf16.mxu0 0
    %569 = vmatmul.mubr.bf16.gmra.mrb[0].mxu0 %v385
    %v570 = vpop.f32.mrb[0].mxu0
    %v571 = vadd.f32 %v339, %v570
    %v572 = vpop.f32.mrb[0].mxu0
    %v573 = vpop.f32.mrb[0].mxu0
    %v574 = vadd.f32 %v339, %v573
    %v575 = vpop.f32.mrb[0].mxu0
    %576 = vmatprep.mubr.bf16.mxu0 0
    %577 = vmatmul.mubr.bf16.gmra.mrb[0].mxu0 %v388
    %v578 = vpop.f32.mrb[0].mxu0
    %v579 = vadd.f32 %v339, %v578
    %v580 = vpop.f32.mrb[0].mxu0
    %v581 = vpop.f32.mrb[0].mxu0
    %v582 = vadd.f32 %v339, %v581
    %v583 = vpop.f32.mrb[0].mxu0
    %584 = vmatprep.mubr.bf16.mxu0 0
    %585 = vmatmul.mubr.bf16.gmra.mrb[0].mxu0 %v391
    %v586 = vpop.f32.mrb[0].mxu0
    %v587 = vadd.f32 %v339, %v586
    %v588 = vpop.f32.mrb[0].mxu0
    %v589 = vpop.f32.mrb[0].mxu0
    %v590 = vadd.f32 %v339, %v589
    %v591 = vpop.f32.mrb[0].mxu0
    %592 = vmatprep.mubr.bf16.mxu0 0
    %593 = vmatmul.mubr.bf16.gmra.mrb[0].mxu0 %v394
    %v594 = vpop.f32.mrb[0].mxu0
    %v595 = vadd.f32 %v339, %v594
    %v596 = vpop.f32.mrb[0].mxu0
    %v597 = vpop.f32.mrb[0].mxu0
    %v598 = vadd.f32 %v339, %v597
    %v599 = vpop.f32.mrb[0].mxu0
    %600 = vmatprep.mubr.bf16.mxu0 0
    %601 = vmatmul.mubr.bf16.gmra.mrb[0].mxu0 %v397
    %v602 = vpop.f32.mrb[0].mxu0
    %v603 = vadd.f32 %v339, %v602
    %v604 = vpop.f32.mrb[0].mxu0
    %v605 = vpop.f32.mrb[0].mxu0
    %v606 = vadd.f32 %v339, %v605
    %v607 = vpop.f32.mrb[0].mxu0
    %608 = vdwg.mxu0
    %v609 = vpack.c.bf16 %v438, %v434
    %v610 = vpack.c.bf16 %v440, %v436
    %v611 = vpack.c.bf16 %v550, %v547
    %v612 = vpack.c.bf16 %v448, %v444
    %v613 = vpack.c.bf16 %v450, %v446
    %v614 = vpack.c.bf16 %v558, %v555
    %v615 = vpack.c.bf16 %v458, %v454
    %v616 = vpack.c.bf16 %v460, %v456
    %v617 = vpack.c.bf16 %v566, %v563
    %v618 = vpack.c.bf16 %v468, %v464
    %v619 = vpack.c.bf16 %v470, %v466
    %v620 = vpack.c.bf16 %v574, %v571
    %v621 = vpack.c.bf16 %v478, %v474
    %v622 = vpack.c.bf16 %v480, %v476
    %v623 = vpack.c.bf16 %v582, %v579
    %v624 = vpack.c.bf16 %v488, %v484
    %v625 = vpack.c.bf16 %v490, %v486
    %v626 = vpack.c.bf16 %v590, %v587
    %v627 = vpack.c.bf16 %v498, %v494
    %v628 = vpack.c.bf16 %v500, %v496
    %v629 = vpack.c.bf16 %v598, %v595
    %v630 = vpack.c.bf16 %v508, %v504
    %v631 = vpack.c.bf16 %v510, %v506
    %v632 = vpack.c.bf16 %v606, %v603
    %v657 = vunpack.c.l.b16 %v609
    %v658 = vunpack.c.l.b16 %v610
    %v659 = vunpack.c.l.b16 %v611
    %v660 = vunpack.c.h.b16 %v609
    %v661 = vunpack.c.h.b16 %v610
    %v662 = vunpack.c.h.b16 %v611
    %v663 = vunpack.c.l.b16 %v612
    %v664 = vunpack.c.l.b16 %v613
    %v665 = vunpack.c.l.b16 %v614
    %v666 = vunpack.c.h.b16 %v612
    %v667 = vunpack.c.h.b16 %v613
    %v668 = vunpack.c.h.b16 %v614
    %v669 = vunpack.c.l.b16 %v615
    %v670 = vunpack.c.l.b16 %v616
    %v671 = vunpack.c.l.b16 %v617
    %v672 = vunpack.c.h.b16 %v615
    %v673 = vunpack.c.h.b16 %v616
    %v674 = vunpack.c.h.b16 %v617
    %v675 = vunpack.c.l.b16 %v618
    %v676 = vunpack.c.l.b16 %v619
    %v677 = vunpack.c.l.b16 %v620
    %v678 = vunpack.c.h.b16 %v618
    %v679 = vunpack.c.h.b16 %v619
    %v680 = vunpack.c.h.b16 %v620
    %v681 = vunpack.c.l.b16 %v621
    %v682 = vunpack.c.l.b16 %v622
    %v683 = vunpack.c.l.b16 %v623
    %v684 = vunpack.c.h.b16 %v621
    %v685 = vunpack.c.h.b16 %v622
    %v686 = vunpack.c.h.b16 %v623
    %v687 = vunpack.c.l.b16 %v624
    %v688 = vunpack.c.l.b16 %v625
    %v689 = vunpack.c.l.b16 %v626
    %v690 = vunpack.c.h.b16 %v624
    %v691 = vunpack.c.h.b16 %v625
    %v692 = vunpack.c.h.b16 %v626
    %v693 = vunpack.c.l.b16 %v627
    %v694 = vunpack.c.l.b16 %v628
    %v695 = vunpack.c.l.b16 %v629
    %v696 = vunpack.c.h.b16 %v627
    %v697 = vunpack.c.h.b16 %v628
    %v698 = vunpack.c.h.b16 %v629
    %v699 = vunpack.c.l.b16 %v630
    %v700 = vunpack.c.l.b16 %v631
    %v701 = vunpack.c.l.b16 %v632
    %v702 = vunpack.c.h.b16 %v630
    %v703 = vunpack.c.h.b16 %v631
    %v704 = vunpack.c.h.b16 %v632
    %v705 = vpack.c.b16 %v658, %v657
    %v706 = vpack.c.b16 %v659, %v659
    %v707 = vpack.c.b16 %v661, %v660
    %v708 = vpack.c.b16 %v662, %v662
    %v709 = vpack.c.b16 %v664, %v663
    %v710 = vpack.c.b16 %v665, %v665
    %v711 = vpack.c.b16 %v667, %v666
    %v712 = vpack.c.b16 %v668, %v668
    %v713 = vpack.c.b16 %v670, %v669
    %v714 = vpack.c.b16 %v671, %v671
    %v715 = vpack.c.b16 %v673, %v672
    %v716 = vpack.c.b16 %v674, %v674
    %v717 = vpack.c.b16 %v676, %v675
    %v718 = vpack.c.b16 %v677, %v677
    %v719 = vpack.c.b16 %v679, %v678
    %v720 = vpack.c.b16 %v680, %v680
    %v721 = vpack.c.b16 %v682, %v681
    %v722 = vpack.c.b16 %v683, %v683
    %v723 = vpack.c.b16 %v685, %v684
    %v724 = vpack.c.b16 %v686, %v686
    %v725 = vpack.c.b16 %v688, %v687
    %v726 = vpack.c.b16 %v689, %v689
    %v727 = vpack.c.b16 %v691, %v690
    %v728 = vpack.c.b16 %v692, %v692
    %v729 = vpack.c.b16 %v694, %v693
    %v730 = vpack.c.b16 %v695, %v695
    %v731 = vpack.c.b16 %v697, %v696
    %v732 = vpack.c.b16 %v698, %v698
    %v733 = vpack.c.b16 %v700, %v699
    %v734 = vpack.c.b16 %v701, %v701
    %v735 = vpack.c.b16 %v703, %v702
    %v736 = vpack.c.b16 %v704, %v704
    %769 = vst [vmem:[#allocation2] sm:$0xff] %v705
    %770 = vst [vmem:[#allocation2 + $0x8] sm:$0xf] %v706
    %771 = vst [vmem:[#allocation2 + $0xc] sm:$0xff] %v707
    %772 = vst [vmem:[#allocation2 + $0x14] sm:$0xf] %v708
    %773 = vst [vmem:[#allocation2 + $0x18] sm:$0xff] %v709
    %774 = vst [vmem:[#allocation2 + $0x20] sm:$0xf] %v710
    %775 = vst [vmem:[#allocation2 + $0x24] sm:$0xff] %v711
    %776 = vst [vmem:[#allocation2 + $0x2c] sm:$0xf] %v712
    %777 = vst [vmem:[#allocation2 + $0x30] sm:$0xff] %v713
    %778 = vst [vmem:[#allocation2 + $0x38] sm:$0xf] %v714
    %779 = vst [vmem:[#allocation2 + $0x3c] sm:$0xff] %v715
    %780 = vst [vmem:[#allocation2 + $0x44] sm:$0xf] %v716
    %781 = vst [vmem:[#allocation2 + $0x48] sm:$0xff] %v717
    %782 = vst [vmem:[#allocation2 + $0x50] sm:$0xf] %v718
    %783 = vst [vmem:[#allocation2 + $0x54] sm:$0xff] %v719
    %784 = vst [vmem:[#allocation2 + $0x5c] sm:$0xf] %v720
    %785 = vst [vmem:[#allocation2 + $0x60] sm:$0xff] %v721
    %786 = vst [vmem:[#allocation2 + $0x68] sm:$0xf] %v722
    %787 = vst [vmem:[#allocation2 + $0x6c] sm:$0xff] %v723
    %788 = vst [vmem:[#allocation2 + $0x74] sm:$0xf] %v724
    %789 = vst [vmem:[#allocation2 + $0x78] sm:$0xff] %v725
    %790 = vst [vmem:[#allocation2 + $0x80] sm:$0xf] %v726
    %791 = vst [vmem:[#allocation2 + $0x84] sm:$0xff] %v727
    %792 = vst [vmem:[#allocation2 + $0x8c] sm:$0xf] %v728
    %793 = vst [vmem:[#allocation2 + $0x90] sm:$0xff] %v729
    %794 = vst [vmem:[#allocation2 + $0x98] sm:$0xf] %v730
    %795 = vst [vmem:[#allocation2 + $0x9c] sm:$0xff] %v731
    %796 = vst [vmem:[#allocation2 + $0xa4] sm:$0xf] %v732
    %797 = vst [vmem:[#allocation2 + $0xa8] sm:$0xff] %v733
    %798 = vst [vmem:[#allocation2 + $0xb0] sm:$0xf] %v734
    %799 = vst [vmem:[#allocation2 + $0xb4] sm:$0xff] %v735
    %800 = vst [vmem:[#allocation2 + $0xbc] sm:$0xf] %v736
    // Predicated region
    $region22: #{tpu_custom_call.1} parent=1 // pred_check
      _
    $region23: #{tpu_custom_call.1} parent=1 // pred_check_branch
      %802 = sbr.rel (0) target = $region25
    $region24: #{tpu_custom_call.1} parent=1 // pred_region
      %s804 = ssub.s32 3072, 3072
      %805 = vsyncadd [#allocation3], %s804
      %s806 = sshll.u32 [#allocation2], 4
      %s807 = int_to_ptr.vmem [resolvable:$true] %s806
      %812 = dma.vmem_to_hbm [thread:$0]  %s807, 3072, %s5, [#allocation3], 192, 192, 12
    $region25: #{tpu_custom_call.1} parent=1 // pred_fallthru
      _
    // Predicated region
    $region26: #{tpu_custom_call.1} parent=1 // pred_check
      _
    $region27: #{tpu_custom_call.1} parent=1 // pred_check_branch
      %814 = sbr.rel (0) target = $region29
    $region28: #{tpu_custom_call.1} parent=1 // pred_region
      %815 = dma.done [#allocation3], 3072
    $region29: #{tpu_custom_call.1} parent=1 // pred_fallthru
      _
    %816 = vsyncpa [#allocation3], 1

</llo_original>
